<compile_context>
chip_gen: v6e
topology: v6e:2x2x1
jax: 0.10.0
libtpu: 0.0.40
codegen_flags: <defaults>
</compile_context>

<pallas_src>
import jax
import jax.numpy as jnp
from jax.experimental import pallas as pl
from jax.experimental.pallas import tpu as pltpu


def _round_up(x, m):
    return ((x + m - 1) // m) * m


def _pick_tile_hw(hw):
    """Lane-dense spatial tile: pad HW to a multiple of 128 and take the
    largest tile (<= 2048 lanes = 16 vreg lanes-widths) dividing it."""
    hw_pad = _round_up(hw, 128)
    k = hw_pad // 128
    best = 1
    for d in range(1, min(k, 16) + 1):
        if k % d == 0:
            best = d
    return 128 * best, hw_pad


def _conv1x1_vpu_kernel(x_ref, w_ref, b_ref, o_ref):
    # x_ref: (1, C_in, T) VMEM | w_ref: (C_out, C_in) SMEM | b_ref: (C_out,) SMEM
    # o_ref: (1, C_out, T) VMEM
    c_in = x_ref.shape[1]
    c_out = o_ref.shape[1]
    xs = [x_ref[:, ci, :] for ci in range(c_in)]          # each (1, T), loaded once
    for co in range(c_out):                               # fully unrolled VPU FMA chain
        acc = xs[0] * w_ref[co, 0] + b_ref[co]
        for ci in range(1, c_in):
            acc = acc + xs[ci] * w_ref[co, ci]
        o_ref[:, co, :] = acc.astype(o_ref.dtype)          # lane-dense (T-wide) store


def _conv1x1_mxu_kernel(x_ref, w_ref, b_ref, o_ref):
    # x_ref: (1, C_in, T) | w_ref: (C_out, C_in) | b_ref: (C_out, 1) | o_ref: (1, C_out, T)
    acc = jnp.dot(w_ref[...], x_ref[0], preferred_element_type=jnp.float32)
    o_ref[0] = (acc + b_ref[...]).astype(o_ref.dtype)


def conv1x1_pallas(x_nchw, weight, bias, *, tile_hw=None):
    """1x1 conv (the wrapped module) as a Pallas kernel, NCHW in / NCHW out.

    x_nchw: (N, C_in, H, W)   weight: (C_in, C_out)   bias: (C_out,)
    returns (N, C_out, H, W)
    """
    N, C_in, H, W = x_nchw.shape
    C_out = weight.shape[1]
    HW = H * W

    if tile_hw is None:
        tile_hw, hw_pad = _pick_tile_hw(HW)
    else:
        hw_pad = _round_up(HW, tile_hw)

    # NCHW -> (N, C_in, HW): contiguous reshape, no transpose / extra HBM pass.
    x3 = x_nchw.reshape(N, C_in, HW)
    if hw_pad != HW:
        x3 = jnp.pad(x3, ((0, 0), (0, 0), (0, hw_pad - HW)))

    w_t = jnp.transpose(weight)                 # (C_out, C_in), tiny

    grid = (N, hw_pad // tile_hw)               # both axes independent -> parallel
    x_spec = pl.BlockSpec((1, C_in, tile_hw), lambda n, j: (n, 0, j))
    o_spec = pl.BlockSpec((1, C_out, tile_hw), lambda n, j: (n, 0, j))

    small_channels = (C_in <= 8) and (C_out <= 8)
    if small_channels:
        # Channel mix on the VPU; weight/bias live in SMEM as scalars.
        kernel = _conv1x1_vpu_kernel
        w_arg, b_arg = w_t, bias
        w_spec = pl.BlockSpec(memory_space=pltpu.MemorySpace.SMEM)
        b_spec = pl.BlockSpec(memory_space=pltpu.MemorySpace.SMEM)
    else:
        # Large channel counts: MXU matmul with resident weight/bias tiles.
        kernel = _conv1x1_mxu_kernel
        w_arg, b_arg = w_t, bias.reshape(C_out, 1)
        w_spec = pl.BlockSpec((C_out, C_in), lambda n, j: (0, 0))
        b_spec = pl.BlockSpec((C_out, 1), lambda n, j: (0, 0))

    out3 = pl.pallas_call(
        kernel,
        out_shape=jax.ShapeDtypeStruct((N, C_out, hw_pad), x_nchw.dtype),
        grid_spec=pltpu.PrefetchScalarGridSpec(
            num_scalar_prefetch=0,
            grid=grid,
            in_specs=[x_spec, w_spec, b_spec],
            out_specs=o_spec,
        ),
        compiler_params=pltpu.CompilerParams(
            dimension_semantics=("parallel", "parallel"),
            # Above v5e's 16 MiB scoped default, with headroom under v7x's
            # 64 MiB physical VMEM.
            vmem_limit_bytes=48 * 1024 * 1024,
        ),
    )(x3, w_arg, b_arg)

    if hw_pad != HW:
        out3 = out3[:, :, :HW]
    return out3.reshape(N, C_out, H, W)


class Toggle:
    """JAX/Pallas equivalent of the PyTorch Toggle wrapper."""

    def __init__(self, module):
        self.module = module
        self.on = True

    def __call__(self, x):
        # Static Python control flow, matching torch's `if self.on`.
        return self.module(x) if self.on else x


if __name__ == "__main__":
    key = jax.random.PRNGKey(0)
    kx, kw, kb = jax.random.split(key, 3)

    N, C_in, H, W = 2, 4, 16, 16
    C_out = 4

    x = jax.random.normal(kx, (N, C_in, H, W), dtype=jnp.float32)
    # Deterministic parameter init for the wrapped 1x1 conv.
    weight = jax.random.normal(kw, (C_in, C_out), dtype=jnp.float32) * 0.1
    bias = jax.random.normal(kb, (C_out,), dtype=jnp.float32) * 0.01

    wrapped = lambda inp: conv1x1_pallas(inp, weight, bias)
    toggle = Toggle(wrapped)

    # on=True -> wrapped module runs (Pallas kernel)
    toggle.on = True
    y_on = jax.block_until_ready(toggle(x))
    assert y_on.shape == (N, C_out, H, W)

    # Reference check for the "on" path.
    ref = jnp.einsum("nchw,co->nohw", x, weight) + bias.reshape(1, C_out, 1, 1)
    assert jnp.allclose(y_on, ref, atol=1e-4, rtol=1e-4)

    # on=False -> identity passthrough
    toggle.on = False
    y_off = jax.block_until_ready(toggle(x))
    assert y_off.shape == x.shape
    assert jnp.array_equal(y_off, x)

    print("KERNEL_OK")
</pallas_src>

<mosaic_0001>
module attributes {stable_mosaic.version = 11 : i64} {
  func.func @_conv1x1_vpu_kernel(%arg0: i32, %arg1: i32, %arg2: memref<1x4x256xf32, #tpu.memory_space<vmem>>, %arg3: memref<4x4xf32, #tpu.memory_space<smem>>, %arg4: memref<4xf32, #tpu.memory_space<smem>>, %arg5: memref<1x4x256xf32, #tpu.memory_space<vmem>>) attributes {dimension_semantics = [#tpu.dimension_semantics<parallel>, #tpu.dimension_semantics<parallel>], iteration_bounds = array<i64: 2, 1>, scalar_prefetch = 0 : i64, scratch_operands = 0 : i64, tpu.core_type = #tpu.core_type<tc>, window_params = [{transform_indices = @transform_0, window_bounds = array<i64: 1, 4, 256>}, {transform_indices = @transform_1, window_bounds = array<i64: 4, 4>}, {transform_indices = @transform_2, window_bounds = array<i64: 4>}, {transform_indices = @transform_3, window_bounds = array<i64: 1, 4, 256>}]} {
    %c0 = arith.constant 0 : index
    %c0_0 = arith.constant 0 : index
    %c0_1 = arith.constant 0 : index
    %0 = vector.load %arg2[%c0, %c0_0, %c0_1] : memref<1x4x256xf32, #tpu.memory_space<vmem>>, vector<1x1x256xf32>
    %1 = vector.shape_cast %0 : vector<1x1x256xf32> to vector<1x256xf32>
    %c0_2 = arith.constant 0 : index
    %c1 = arith.constant 1 : index
    %c0_3 = arith.constant 0 : index
    %2 = vector.load %arg2[%c0_2, %c1, %c0_3] : memref<1x4x256xf32, #tpu.memory_space<vmem>>, vector<1x1x256xf32>
    %3 = vector.shape_cast %2 : vector<1x1x256xf32> to vector<1x256xf32>
    %c0_4 = arith.constant 0 : index
    %c2 = arith.constant 2 : index
    %c0_5 = arith.constant 0 : index
    %4 = vector.load %arg2[%c0_4, %c2, %c0_5] : memref<1x4x256xf32, #tpu.memory_space<vmem>>, vector<1x1x256xf32>
    %5 = vector.shape_cast %4 : vector<1x1x256xf32> to vector<1x256xf32>
    %c0_6 = arith.constant 0 : index
    %c3 = arith.constant 3 : index
    %c0_7 = arith.constant 0 : index
    %6 = vector.load %arg2[%c0_6, %c3, %c0_7] : memref<1x4x256xf32, #tpu.memory_space<vmem>>, vector<1x1x256xf32>
    %7 = vector.shape_cast %6 : vector<1x1x256xf32> to vector<1x256xf32>
    %c0_8 = arith.constant 0 : index
    %c0_9 = arith.constant 0 : index
    %8 = memref.load %arg3[%c0_8, %c0_9] : memref<4x4xf32, #tpu.memory_space<smem>>
    %9 = vector.broadcast %8 : f32 to vector<1x256xf32>
    %10 = arith.mulf %1, %9 : vector<1x256xf32>
    %c0_10 = arith.constant 0 : index
    %11 = memref.load %arg4[%c0_10] : memref<4xf32, #tpu.memory_space<smem>>
    %12 = vector.broadcast %11 : f32 to vector<1x256xf32>
    %13 = arith.addf %10, %12 : vector<1x256xf32>
    %c0_11 = arith.constant 0 : index
    %c1_12 = arith.constant 1 : index
    %14 = memref.load %arg3[%c0_11, %c1_12] : memref<4x4xf32, #tpu.memory_space<smem>>
    %15 = vector.broadcast %14 : f32 to vector<1x256xf32>
    %16 = arith.mulf %3, %15 : vector<1x256xf32>
    %17 = arith.addf %13, %16 : vector<1x256xf32>
    %c0_13 = arith.constant 0 : index
    %c2_14 = arith.constant 2 : index
    %18 = memref.load %arg3[%c0_13, %c2_14] : memref<4x4xf32, #tpu.memory_space<smem>>
    %19 = vector.broadcast %18 : f32 to vector<1x256xf32>
    %20 = arith.mulf %5, %19 : vector<1x256xf32>
    %21 = arith.addf %17, %20 : vector<1x256xf32>
    %c0_15 = arith.constant 0 : index
    %c3_16 = arith.constant 3 : index
    %22 = memref.load %arg3[%c0_15, %c3_16] : memref<4x4xf32, #tpu.memory_space<smem>>
    %23 = vector.broadcast %22 : f32 to vector<1x256xf32>
    %24 = arith.mulf %7, %23 : vector<1x256xf32>
    %25 = arith.addf %21, %24 : vector<1x256xf32>
    %c0_17 = arith.constant 0 : index
    %c0_18 = arith.constant 0 : index
    %c0_19 = arith.constant 0 : index
    %26 = vector.load %arg5[%c0_17, %c0_18, %c0_19] : memref<1x4x256xf32, #tpu.memory_space<vmem>>, vector<1x1x256xf32>
    %27 = vector.shape_cast %26 : vector<1x1x256xf32> to vector<1x256xf32>
    %28 = vector.shape_cast %25 : vector<1x256xf32> to vector<1x1x256xf32>
    tpu.vector_store %arg5[%c0_17, %c0_18, %c0_19], %28 {strides = array<i32>} : memref<1x4x256xf32, #tpu.memory_space<vmem>>, vector<1x1x256xf32>,
    %c1_20 = arith.constant 1 : index
    %c0_21 = arith.constant 0 : index
    %29 = memref.load %arg3[%c1_20, %c0_21] : memref<4x4xf32, #tpu.memory_space<smem>>
    %30 = vector.broadcast %29 : f32 to vector<1x256xf32>
    %31 = arith.mulf %1, %30 : vector<1x256xf32>
    %c1_22 = arith.constant 1 : index
    %32 = memref.load %arg4[%c1_22] : memref<4xf32, #tpu.memory_space<smem>>
    %33 = vector.broadcast %32 : f32 to vector<1x256xf32>
    %34 = arith.addf %31, %33 : vector<1x256xf32>
    %c1_23 = arith.constant 1 : index
    %c1_24 = arith.constant 1 : index
    %35 = memref.load %arg3[%c1_23, %c1_24] : memref<4x4xf32, #tpu.memory_space<smem>>
    %36 = vector.broadcast %35 : f32 to vector<1x256xf32>
    %37 = arith.mulf %3, %36 : vector<1x256xf32>
    %38 = arith.addf %34, %37 : vector<1x256xf32>
    %c1_25 = arith.constant 1 : index
    %c2_26 = arith.constant 2 : index
    %39 = memref.load %arg3[%c1_25, %c2_26] : memref<4x4xf32, #tpu.memory_space<smem>>
    %40 = vector.broadcast %39 : f32 to vector<1x256xf32>
    %41 = arith.mulf %5, %40 : vector<1x256xf32>
    %42 = arith.addf %38, %41 : vector<1x256xf32>
    %c1_27 = arith.constant 1 : index
    %c3_28 = arith.constant 3 : index
    %43 = memref.load %arg3[%c1_27, %c3_28] : memref<4x4xf32, #tpu.memory_space<smem>>
    %44 = vector.broadcast %43 : f32 to vector<1x256xf32>
    %45 = arith.mulf %7, %44 : vector<1x256xf32>
    %46 = arith.addf %42, %45 : vector<1x256xf32>
    %c0_29 = arith.constant 0 : index
    %c1_30 = arith.constant 1 : index
    %c0_31 = arith.constant 0 : index
    %47 = vector.load %arg5[%c0_29, %c1_30, %c0_31] : memref<1x4x256xf32, #tpu.memory_space<vmem>>, vector<1x1x256xf32>
    %48 = vector.shape_cast %47 : vector<1x1x256xf32> to vector<1x256xf32>
    %49 = vector.shape_cast %46 : vector<1x256xf32> to vector<1x1x256xf32>
    tpu.vector_store %arg5[%c0_29, %c1_30, %c0_31], %49 {strides = array<i32>} : memref<1x4x256xf32, #tpu.memory_space<vmem>>, vector<1x1x256xf32>,
    %c2_32 = arith.constant 2 : index
    %c0_33 = arith.constant 0 : index
    %50 = memref.load %arg3[%c2_32, %c0_33] : memref<4x4xf32, #tpu.memory_space<smem>>
    %51 = vector.broadcast %50 : f32 to vector<1x256xf32>
    %52 = arith.mulf %1, %51 : vector<1x256xf32>
    %c2_34 = arith.constant 2 : index
    %53 = memref.load %arg4[%c2_34] : memref<4xf32, #tpu.memory_space<smem>>
    %54 = vector.broadcast %53 : f32 to vector<1x256xf32>
    %55 = arith.addf %52, %54 : vector<1x256xf32>
    %c2_35 = arith.constant 2 : index
    %c1_36 = arith.constant 1 : index
    %56 = memref.load %arg3[%c2_35, %c1_36] : memref<4x4xf32, #tpu.memory_space<smem>>
    %57 = vector.broadcast %56 : f32 to vector<1x256xf32>
    %58 = arith.mulf %3, %57 : vector<1x256xf32>
    %59 = arith.addf %55, %58 : vector<1x256xf32>
    %c2_37 = arith.constant 2 : index
    %c2_38 = arith.constant 2 : index
    %60 = memref.load %arg3[%c2_37, %c2_38] : memref<4x4xf32, #tpu.memory_space<smem>>
    %61 = vector.broadcast %60 : f32 to vector<1x256xf32>
    %62 = arith.mulf %5, %61 : vector<1x256xf32>
    %63 = arith.addf %59, %62 : vector<1x256xf32>
    %c2_39 = arith.constant 2 : index
    %c3_40 = arith.constant 3 : index
    %64 = memref.load %arg3[%c2_39, %c3_40] : memref<4x4xf32, #tpu.memory_space<smem>>
    %65 = vector.broadcast %64 : f32 to vector<1x256xf32>
    %66 = arith.mulf %7, %65 : vector<1x256xf32>
    %67 = arith.addf %63, %66 : vector<1x256xf32>
    %c0_41 = arith.constant 0 : index
    %c2_42 = arith.constant 2 : index
    %c0_43 = arith.constant 0 : index
    %68 = vector.load %arg5[%c0_41, %c2_42, %c0_43] : memref<1x4x256xf32, #tpu.memory_space<vmem>>, vector<1x1x256xf32>
    %69 = vector.shape_cast %68 : vector<1x1x256xf32> to vector<1x256xf32>
    %70 = vector.shape_cast %67 : vector<1x256xf32> to vector<1x1x256xf32>
    tpu.vector_store %arg5[%c0_41, %c2_42, %c0_43], %70 {strides = array<i32>} : memref<1x4x256xf32, #tpu.memory_space<vmem>>, vector<1x1x256xf32>,
    %c3_44 = arith.constant 3 : index
    %c0_45 = arith.constant 0 : index
    %71 = memref.load %arg3[%c3_44, %c0_45] : memref<4x4xf32, #tpu.memory_space<smem>>
    %72 = vector.broadcast %71 : f32 to vector<1x256xf32>
    %73 = arith.mulf %1, %72 : vector<1x256xf32>
    %c3_46 = arith.constant 3 : index
    %74 = memref.load %arg4[%c3_46] : memref<4xf32, #tpu.memory_space<smem>>
    %75 = vector.broadcast %74 : f32 to vector<1x256xf32>
    %76 = arith.addf %73, %75 : vector<1x256xf32>
    %c3_47 = arith.constant 3 : index
    %c1_48 = arith.constant 1 : index
    %77 = memref.load %arg3[%c3_47, %c1_48] : memref<4x4xf32, #tpu.memory_space<smem>>
    %78 = vector.broadcast %77 : f32 to vector<1x256xf32>
    %79 = arith.mulf %3, %78 : vector<1x256xf32>
    %80 = arith.addf %76, %79 : vector<1x256xf32>
    %c3_49 = arith.constant 3 : index
    %c2_50 = arith.constant 2 : index
    %81 = memref.load %arg3[%c3_49, %c2_50] : memref<4x4xf32, #tpu.memory_space<smem>>
    %82 = vector.broadcast %81 : f32 to vector<1x256xf32>
    %83 = arith.mulf %5, %82 : vector<1x256xf32>
    %84 = arith.addf %80, %83 : vector<1x256xf32>
    %c3_51 = arith.constant 3 : index
    %c3_52 = arith.constant 3 : index
    %85 = memref.load %arg3[%c3_51, %c3_52] : memref<4x4xf32, #tpu.memory_space<smem>>
    %86 = vector.broadcast %85 : f32 to vector<1x256xf32>
    %87 = arith.mulf %7, %86 : vector<1x256xf32>
    %88 = arith.addf %84, %87 : vector<1x256xf32>
    %c0_53 = arith.constant 0 : index
    %c3_54 = arith.constant 3 : index
    %c0_55 = arith.constant 0 : index
    %89 = vector.load %arg5[%c0_53, %c3_54, %c0_55] : memref<1x4x256xf32, #tpu.memory_space<vmem>>, vector<1x1x256xf32>
    %90 = vector.shape_cast %89 : vector<1x1x256xf32> to vector<1x256xf32>
    %91 = vector.shape_cast %88 : vector<1x256xf32> to vector<1x1x256xf32>
    tpu.vector_store %arg5[%c0_53, %c3_54, %c0_55], %91 {strides = array<i32>} : memref<1x4x256xf32, #tpu.memory_space<vmem>>, vector<1x1x256xf32>,
    return
  }
  func.func @transform_0(%arg0: i32, %arg1: i32) -> (i32, i32, i32) {
    %c0_i32 = arith.constant 0 : i32
    %c0_i32_0 = arith.constant 0 : i32
    return %arg0, %c0_i32, %arg1 : i32, i32, i32
  }
  func.func @transform_1(%arg0: i32, %arg1: i32) -> (i32, i32) {
    %c0_i32 = arith.constant 0 : i32
    %c0_i32_0 = arith.constant 0 : i32
    %c0_i32_1 = arith.constant 0 : i32
    return %c0_i32, %c0_i32_0 : i32, i32
  }
  func.func @transform_2(%arg0: i32, %arg1: i32) -> i32 {
    %c0_i32 = arith.constant 0 : i32
    %c0_i32_0 = arith.constant 0 : i32
    return %c0_i32 : i32
  }
  func.func @transform_3(%arg0: i32, %arg1: i32) -> (i32, i32, i32) {
    %c0_i32 = arith.constant 0 : i32
    %c0_i32_0 = arith.constant 0 : i32
    return %arg0, %c0_i32, %arg1 : i32, i32, i32
  }
}

</mosaic_0001>

<llo_original>
// kernel: tpu_custom_call.1
$region0: #{tpu_custom_call.1}
  #allocation0 [shape = 'u32[]', space=smem, size = 0x4, offset = 0x4, fixed_abs, tag = 'smem constant byte address 0x4 - core index']
  #allocation1 [shape = 'u32[144,128]{1,0:T(1,128)}', space=vmem, size = 0x12000, scoped, tag = 'internal scratch']
  %s0 = inlined_call_operand.hbm [shape: f32[2,4,256], index: 0, kind: input, shape index: {}]
  %s1 = inlined_call_operand.hbm [shape: f32[4,4], index: 1, kind: input, shape index: {}]
  %s2 = inlined_call_operand.vmem [shape: f32[4], index: 2, kind: input, shape index: {}]
  %s3 = inlined_call_operand.hbm [shape: f32[2,4,256], index: 3, kind: output, shape index: {}]
  %s4 = sld [smem:[#allocation0]]
  $region57: #{tpu_custom_call.1} parent=0
    _
  %s6 = ssub.s32 1, %s4
  %s7 = scalar_select 0, %s6, %s4
  $region1: #{tpu_custom_call.1} parent=0
    #allocation2 [shape = 'u8[8192]{0}', space=vmem, size = 0x2000, scoped, tag = 'input window, operand 0']
    #allocation3 [shape = 's32[2]{0}', space=sflag, size = 0x8, scoped, tag = 'scoped memory for tpu_custom_call.1']
    #allocation4 [shape = 's32[2]{0}', space=sflag, size = 0x8, scoped, tag = 'scoped memory for tpu_custom_call.1']
    #allocation5 [shape = 's32[2]{0}', space=sflag, size = 0x8, scoped, tag = 'scoped memory for tpu_custom_call.1']
    #allocation6 [shape = 's32[2]{0}', space=sflag, size = 0x8, scoped, tag = 'scoped memory for tpu_custom_call.1']
    #allocation7 [shape = 'u8[2048]{0}', space=smem, size = 0x800, scoped, tag = 'input window, operand 1, single buffered']
    #allocation8 [shape = 'u8[512]{0}', space=smem, size = 0x200, scoped, tag = 'input window, operand 2, single buffered']
    #allocation9 [shape = 'u8[8192]{0}', space=vmem, size = 0x2000, scoped, tag = 'output window, operand 0']
    %8 = vsyncpa [#allocation3], 0
    %s9 = scalar_lea.sflag [#allocation3], 1
    %10 = vsyncpa %s9, 0
    %11 = vsyncpa [#allocation5], 0
    %12 = vsyncpa [#allocation6], 0
    %13 = vsyncpa [#allocation4], 0
    %s14 = scalar_lea.sflag [#allocation4], 1
    %15 = vsyncpa %s14, 0
    loop: start=0, step=1, limit=4
    $region2: #{tpu_custom_call.1} parent=1 // loop_pre_header
      _
    $region3: #{tpu_custom_call.1} parent=1 // loop_header
      %s17 = sphi 0, %s21
      %p18 = scmp.ge.s32.totalorder %s17, 4
      %s24 = sphi 0, %s36
      %s25 = sphi 0, %s32
      %s26 = sphi 0, %s24
      %s27 = sphi 0, %s25
      %s28 = sphi 0, %s26
      %s29 = sphi 0, %s27
      %s41 = sphi 0, %s43
      %s44 = sphi 0, %s41
      %s45 = sphi 0, %s44
      %s61 = sphi 0, %s45
      %s65 = sphi 0, %s65
      %s67 = sphi 0, %s65
      %s68 = sphi 0, %s67
      %s82 = sphi 0, %s68
      %s86 = sphi 0, %s86
      %s88 = sphi 0, %s86
      %s89 = sphi 0, %s88
      %s103 = sphi 0, %s89
      %s111 = sphi 0, %s113
      %s114 = sphi 0, %s111
      %s115 = sphi 0, %s114
      %s131 = sphi 0, %s115
    $region4: #{tpu_custom_call.1} parent=1 // loop_header_branch
      %20 = sbr.rel (%p18) target = $region8
    $region5: #{tpu_custom_call.1} parent=1 // loop_body
      %s22 = ssub.s32 %s17, 1
      %s23 = ssub.s32 %s17, 2
      %s30 = sadd.s32 1, %s25
      %p31 = scmp.ge.s32.totalorder %s30, 1
      %s32 = scalar_select %p31, 0, %s30
      %s33 = sadd.s32 1, %s24
      %s34 = scalar_select %p31, %s33, %s24
      %p35 = scmp.ge.s32.totalorder %s34, 2
      %s36 = scalar_select %p35, 0, %s34
      %s37 = ssub.s32 %s24, %s36
      %s38 = ssub.s32 %s25, %s32
      %s39 = sor.u32 %s37, %s38
      %p40 = scmp.eq.s32.totalorder %s39, 0
      %s42 = sadd.s32 %s41, 1
      %s43 = scalar_select %p40, %s41, %s42
      %p46 = pneg %p40
      %p47 = scmp.eq.s32.totalorder %s17, 1
      %p48 = por %p46, %p47
      %p49 = scmp.ne.s32.totalorder %s41, %s44
      %p50 = scmp.eq.s32.totalorder %s17, 0
      %p51 = por %p49, %p50
      %p52 = scmp.ne.s32.totalorder %s41, %s44
      %p53 = scmp.eq.s32.totalorder %s22, 1
      %p54 = por %p52, %p53
      %p55 = scmp.ne.s32.totalorder %s44, %s45
      %p56 = scmp.eq.s32.totalorder %s22, 0
      %p57 = por %p55, %p56
      %p58 = scmp.ne.s32.totalorder %s44, %s45
      %p59 = scmp.eq.s32.totalorder %s23, 1
      %p60 = por %p58, %p59
      %p62 = scmp.ne.s32.totalorder %s45, %s61
      %p63 = scmp.eq.s32.totalorder %s23, 0
      %p64 = por %p62, %p63
      %s66 = sadd.s32 %s65, 1
      %p69 = scmp.eq.s32.totalorder %s17, 1
      %p70 = scmp.ne.s32.totalorder %s65, %s67
      %p71 = scmp.eq.s32.totalorder %s17, 0
      %p72 = por %p70, %p71
      %p73 = scmp.ne.s32.totalorder %s65, %s67
      %p74 = scmp.eq.s32.totalorder %s22, 1
      %p75 = por %p73, %p74
      %p76 = scmp.ne.s32.totalorder %s67, %s68
      %p77 = scmp.eq.s32.totalorder %s22, 0
      %p78 = por %p76, %p77
      %p79 = scmp.ne.s32.totalorder %s67, %s68
      %p80 = scmp.eq.s32.totalorder %s23, 1
      %p81 = por %p79, %p80
      %p83 = scmp.ne.s32.totalorder %s68, %s82
      %p84 = scmp.eq.s32.totalorder %s23, 0
      %p85 = por %p83, %p84
      %s87 = sadd.s32 %s86, 1
      %p90 = scmp.eq.s32.totalorder %s17, 1
      %p91 = scmp.ne.s32.totalorder %s86, %s88
      %p92 = scmp.eq.s32.totalorder %s17, 0
      %p93 = por %p91, %p92
      %p94 = scmp.ne.s32.totalorder %s86, %s88
      %p95 = scmp.eq.s32.totalorder %s22, 1
      %p96 = por %p94, %p95
      %p97 = scmp.ne.s32.totalorder %s88, %s89
      %p98 = scmp.eq.s32.totalorder %s22, 0
      %p99 = por %p97, %p98
      %p100 = scmp.ne.s32.totalorder %s88, %s89
      %p101 = scmp.eq.s32.totalorder %s23, 1
      %p102 = por %p100, %p101
      %p104 = scmp.ne.s32.totalorder %s89, %s103
      %p105 = scmp.eq.s32.totalorder %s23, 0
      %p106 = por %p104, %p105
      %s107 = ssub.s32 %s24, %s36
      %s108 = ssub.s32 %s25, %s32
      %s109 = sor.u32 %s107, %s108
      %p110 = scmp.eq.s32.totalorder %s109, 0
      %s112 = sadd.s32 %s111, 1
      %s113 = scalar_select %p110, %s111, %s112
      %p116 = pneg %p110
      %p117 = scmp.eq.s32.totalorder %s17, 1
      %p118 = por %p116, %p117
      %p119 = scmp.ne.s32.totalorder %s111, %s114
      %p120 = scmp.eq.s32.totalorder %s17, 0
      %p121 = por %p119, %p120
      %p122 = scmp.ne.s32.totalorder %s111, %s114
      %p123 = scmp.eq.s32.totalorder %s22, 1
      %p124 = por %p122, %p123
      %p125 = scmp.ne.s32.totalorder %s114, %s115
      %p126 = scmp.eq.s32.totalorder %s22, 0
      %p127 = por %p125, %p126
      %p128 = scmp.ne.s32.totalorder %s114, %s115
      %p129 = scmp.eq.s32.totalorder %s23, 1
      %p130 = por %p128, %p129
      %p132 = scmp.ne.s32.totalorder %s115, %s131
      %p133 = scmp.eq.s32.totalorder %s23, 0
      %p134 = por %p132, %p133
      %p135 = scmp.le.s32.totalorder 1, %s17
      %p136 = scmp.lt.s32.totalorder %s17, 3
      %p137 = pnand %p135, %p136
      %p138 = pneg %p137
      // Predicated region
      $region9: #{tpu_custom_call.1} parent=5 // pred_check
        _
      $region10: #{tpu_custom_call.1} parent=5 // pred_check_branch
        %140 = sbr.rel (%p137) target = $region12
      $region11: #{tpu_custom_call.1} parent=5 // pred_region
        %s141 = ssub.s32 %s17, 1
        // Predicated region
        $region13: #{tpu_custom_call.1} parent=11 // pred_check
          %p142 = pneg %p78
        $region14: #{tpu_custom_call.1} parent=11 // pred_check_branch
          %144 = sbr.rel (%p142) target = $region16
        $region15: #{tpu_custom_call.1} parent=11 // pred_region
          %s146 = ssub.s32 64, 64
          %147 = vsyncadd [#allocation5], %s146
          %150 = dma.hbm_to_smem %s1, 64, [#allocation7], [#allocation5]
        $region16: #{tpu_custom_call.1} parent=11 // pred_fallthru
          _
        // Predicated region
        $region17: #{tpu_custom_call.1} parent=11 // pred_check
          %p151 = pneg %p99
        $region18: #{tpu_custom_call.1} parent=11 // pred_check_branch
          %153 = sbr.rel (%p151) target = $region20
        $region19: #{tpu_custom_call.1} parent=11 // pred_region
          %s155 = ssub.s32 16, 16
          %156 = vsyncadd [#allocation6], %s155
          %s158 = sshll.u32 %s2, 4
          %s159 = int_to_ptr.vmem [resolvable:$true] %s158
          %161 = dma.vmem_to_smem %s159, 16, [#allocation8], [#allocation6]
        $region20: #{tpu_custom_call.1} parent=11 // pred_fallthru
          _
      $region12: #{tpu_custom_call.1} parent=5 // pred_fallthru
        _
      %p162 = scmp.lt.s32.totalorder %s17, 2
      // Predicated region
      $region21: #{tpu_custom_call.1} parent=5 // pred_check
        %p163 = pneg %p162
      $region22: #{tpu_custom_call.1} parent=5 // pred_check_branch
        %165 = sbr.rel (%p163) target = $region24
      $region23: #{tpu_custom_call.1} parent=5 // pred_region
        // Predicated region
        $region25: #{tpu_custom_call.1} parent=23 // pred_check
          %p166 = pneg %p51
        $region26: #{tpu_custom_call.1} parent=23 // pred_check_branch
          %168 = sbr.rel (%p166) target = $region28
        $region27: #{tpu_custom_call.1} parent=23 // pred_region
          %s169 = sand.u32 %s41, 1
          %s170 = scalar_lea.sflag [#allocation3], %s169
          %s171 = sand.u32 %s41, 1
          %s172 = smul.addr %s171, 8
          %s173 = scalar_lea.vmem [#allocation2], %s172
          %s174 = smul.u32 2, %s25
          %s176 = ssub.s32 128, 128
          %177 = vsyncadd %s170, %s176
          %s178 = smul.addr %s24, 2
          %s179 = sadd.s32 %s174, %s178
          %s180 = smul.addr %s179, 64
          %s181 = scalar_lea.hbm %s0, %s180
          %s183 = sshll.u32 %s173, 4
          %s184 = int_to_ptr.vmem [resolvable:$true] %s183
          %186 = dma.hbm_to_vmem [thread:$0]  %s181, 128, %s184, %s170
        $region28: #{tpu_custom_call.1} parent=23 // pred_fallthru
          _
      $region24: #{tpu_custom_call.1} parent=5 // pred_fallthru
        _
      %p187 = scmp.le.s32.totalorder 1, %s17
      %p188 = scmp.lt.s32.totalorder %s17, 3
      %p189 = pnand %p187, %p188
      %p190 = pneg %p189
      // Predicated region
      $region29: #{tpu_custom_call.1} parent=5 // pred_check
        _
      $region30: #{tpu_custom_call.1} parent=5 // pred_check_branch
        %192 = sbr.rel (%p189) target = $region32
      $region31: #{tpu_custom_call.1} parent=5 // pred_region
        %s193 = ssub.s32 %s17, 1
        %s194 = sand.u32 %s44, 1
        %s195 = scalar_lea.sflag [#allocation3], %s194
        %s196 = sand.u32 %s44, 1
        %s197 = smul.addr %s196, 8
        %s198 = scalar_lea.vmem [#allocation2], %s197
        // Predicated region
        $region33: #{tpu_custom_call.1} parent=31 // pred_check
          %p199 = pneg %p57
        $region34: #{tpu_custom_call.1} parent=31 // pred_check_branch
          %201 = sbr.rel (%p199) target = $region36
        $region35: #{tpu_custom_call.1} parent=31 // pred_region
          %202 = dma.done %s195, 128
        $region36: #{tpu_custom_call.1} parent=31 // pred_fallthru
          _
        // Predicated region
        $region37: #{tpu_custom_call.1} parent=31 // pred_check
          %p203 = pneg %p78
        $region38: #{tpu_custom_call.1} parent=31 // pred_check_branch
          %205 = sbr.rel (%p203) target = $region40
        $region39: #{tpu_custom_call.1} parent=31 // pred_region
          %206 = dma.done [#allocation5], 64
        $region40: #{tpu_custom_call.1} parent=31 // pred_fallthru
          _
        // Predicated region
        $region41: #{tpu_custom_call.1} parent=31 // pred_check
          %p207 = pneg %p99
        $region42: #{tpu_custom_call.1} parent=31 // pred_check_branch
          %209 = sbr.rel (%p207) target = $region44
        $region43: #{tpu_custom_call.1} parent=31 // pred_region
          %210 = dma.done [#allocation6], 16
        $region44: #{tpu_custom_call.1} parent=31 // pred_fallthru
          _
        %211 = sfence
        %s212 = sand.u32 %s44, 1
        %s213 = scalar_lea.sflag [#allocation3], %s212
        %s214 = sand.u32 %s44, 1
        %s215 = smul.addr %s214, 8
        %s216 = scalar_lea.vmem [#allocation2], %s215
        %p217 = pneg %p57
        %p218 = pneg %p54
        %p219 = pneg %p78
        %p220 = pneg %p75
        %p221 = pneg %p99
        %p222 = pneg %p96
        %p223 = pneg %p127
        %p224 = pneg %p124
        %s225 = sand.u32 %s114, 1
        %s226 = scalar_lea.sflag [#allocation4], %s225
        %s227 = sand.u32 %s114, 1
        %s228 = smul.addr %s227, 8
        %s229 = scalar_lea.vmem [#allocation9], %s228
        %s230 = smul.u32 2, %s27
        %s231 = smul.u32 2, %s27
        %v232 = vld [vmem:[%s198] ss:$4 sm:$0x3]
        %s233 = scalar_lea.vmem %s198, 1 [#allocation2]
        %v234 = vld [vmem:[%s233] ss:$4 sm:$0x3]
        %s235 = scalar_lea.vmem %s198, 2 [#allocation2]
        %v236 = vld [vmem:[%s235] ss:$4 sm:$0x3]
        %s237 = scalar_lea.vmem %s198, 3 [#allocation2]
        %v238 = vld [vmem:[%s237] ss:$4 sm:$0x3]
        %s239 = sld [smem:[#allocation7]]
        %v240 = vstv %s239
        %v241 = vmul.f32 %v232, %v240
        %s242 = sld [smem:[#allocation8]]
        %v243 = vstv %s242
        %v244 = vadd.f32 %v241, %v243
        %s245 = sld [smem:[#allocation7 + $0x1]]
        %v246 = vstv %s245
        %v247 = vmul.f32 %v234, %v246
        %v248 = vadd.f32 %v244, %v247
        %s249 = sld [smem:[#allocation7 + $0x2]]
        %v250 = vstv %s249
        %v251 = vmul.f32 %v236, %v250
        %v252 = vadd.f32 %v248, %v251
        %s253 = sld [smem:[#allocation7 + $0x3]]
        %v254 = vstv %s253
        %v255 = vmul.f32 %v238, %v254
        %v256 = vadd.f32 %v252, %v255
        %v257 = vlaneseq
        %vm258 = vcmp.ge.s32.totalorder %v257, 0
        %vm259 = vcmp.lt.s32.totalorder %v257, 256
        %vm260 = vmand %vm258, %vm259
        %261 = vst.msk [vmem:[%s229] ss:$4 sm:$0x3] %vm260, %v256
        %s262 = sld [smem:[#allocation7 + $0x80]]
        %v263 = vstv %s262
        %v264 = vmul.f32 %v232, %v263
        %s265 = sld [smem:[#allocation8 + $0x1]]
        %v266 = vstv %s265
        %v267 = vadd.f32 %v264, %v266
        %s268 = sld [smem:[#allocation7 + $0x81]]
        %v269 = vstv %s268
        %v270 = vmul.f32 %v234, %v269
        %v271 = vadd.f32 %v267, %v270
        %s272 = sld [smem:[#allocation7 + $0x82]]
        %v273 = vstv %s272
        %v274 = vmul.f32 %v236, %v273
        %v275 = vadd.f32 %v271, %v274
        %s276 = sld [smem:[#allocation7 + $0x83]]
        %v277 = vstv %s276
        %v278 = vmul.f32 %v238, %v277
        %v279 = vadd.f32 %v275, %v278
        %s280 = scalar_lea.vmem %s229, 1 [#allocation9]
        %281 = vst.msk [vmem:[%s280] ss:$4 sm:$0x3] %vm260, %v279
        %s282 = sld [smem:[#allocation7 + $0x100]]
        %v283 = vstv %s282
        %v284 = vmul.f32 %v232, %v283
        %s285 = sld [smem:[#allocation8 + $0x2]]
        %v286 = vstv %s285
        %v287 = vadd.f32 %v284, %v286
        %s288 = sld [smem:[#allocation7 + $0x101]]
        %v289 = vstv %s288
        %v290 = vmul.f32 %v234, %v289
        %v291 = vadd.f32 %v287, %v290
        %s292 = sld [smem:[#allocation7 + $0x102]]
        %v293 = vstv %s292
        %v294 = vmul.f32 %v236, %v293
        %v295 = vadd.f32 %v291, %v294
        %s296 = sld [smem:[#allocation7 + $0x103]]
        %v297 = vstv %s296
        %v298 = vmul.f32 %v238, %v297
        %v299 = vadd.f32 %v295, %v298
        %s300 = scalar_lea.vmem %s229, 2 [#allocation9]
        %301 = vst.msk [vmem:[%s300] ss:$4 sm:$0x3] %vm260, %v299
        %s302 = sld [smem:[#allocation7 + $0x180]]
        %v303 = vstv %s302
        %v304 = vmul.f32 %v232, %v303
        %s305 = sld [smem:[#allocation8 + $0x3]]
        %v306 = vstv %s305
        %v307 = vadd.f32 %v304, %v306
        %s308 = sld [smem:[#allocation7 + $0x181]]
        %v309 = vstv %s308
        %v310 = vmul.f32 %v234, %v309
        %v311 = vadd.f32 %v307, %v310
        %s312 = sld [smem:[#allocation7 + $0x182]]
        %v313 = vstv %s312
        %v314 = vmul.f32 %v236, %v313
        %v315 = vadd.f32 %v311, %v314
        %s316 = sld [smem:[#allocation7 + $0x183]]
        %v317 = vstv %s316
        %v318 = vmul.f32 %v238, %v317
        %v319 = vadd.f32 %v315, %v318
        %s320 = scalar_lea.vmem %s229, 3 [#allocation9]
        %321 = vst.msk [vmem:[%s320] ss:$4 sm:$0x3] %vm260, %v319
        %s322 = sand.u32 %s114, 1
        %s323 = scalar_lea.sflag [#allocation4], %s322
        %s324 = sand.u32 %s114, 1
        %s325 = smul.addr %s324, 8
        %s326 = scalar_lea.vmem [#allocation9], %s325
        // Predicated region
        $region45: #{tpu_custom_call.1} parent=31 // pred_check
          %p327 = pneg %p124
        $region46: #{tpu_custom_call.1} parent=31 // pred_check_branch
          %329 = sbr.rel (%p327) target = $region48
        $region47: #{tpu_custom_call.1} parent=31 // pred_region
          %s330 = smul.u32 2, %s27
          %s332 = ssub.s32 128, 128
          %333 = vsyncadd %s323, %s332
          %s334 = smul.addr %s26, 2
          %s335 = sadd.s32 %s330, %s334
          %s336 = smul.addr %s335, 64
          %s337 = scalar_lea.hbm %s3, %s336
          %s339 = sshll.u32 %s326, 4
          %s340 = int_to_ptr.vmem [resolvable:$true] %s339
          %342 = dma.vmem_to_hbm [thread:$0]  %s340, 128, %s337, %s323
        $region48: #{tpu_custom_call.1} parent=31 // pred_fallthru
          _
      $region32: #{tpu_custom_call.1} parent=5 // pred_fallthru
        _
      %p343 = scmp.le.s32.totalorder 2, %s17
      // Predicated region
      $region49: #{tpu_custom_call.1} parent=5 // pred_check
        %p344 = pneg %p343
      $region50: #{tpu_custom_call.1} parent=5 // pred_check_branch
        %346 = sbr.rel (%p344) target = $region52
      $region51: #{tpu_custom_call.1} parent=5 // pred_region
        %s347 = ssub.s32 %s17, 2
        // Predicated region
        $region53: #{tpu_custom_call.1} parent=51 // pred_check
          %p348 = pneg %p130
        $region54: #{tpu_custom_call.1} parent=51 // pred_check_branch
          %350 = sbr.rel (%p348) target = $region56
        $region55: #{tpu_custom_call.1} parent=51 // pred_region
          %s351 = sand.u32 %s115, 1
          %s352 = scalar_lea.sflag [#allocation4], %s351
          %s353 = sand.u32 %s115, 1
          %s354 = smul.addr %s353, 8
          %s355 = scalar_lea.vmem [#allocation9], %s354
          %356 = dma.done %s352, 128
        $region56: #{tpu_custom_call.1} parent=51 // pred_fallthru
          _
      $region52: #{tpu_custom_call.1} parent=5 // pred_fallthru
        _
    $region6: #{tpu_custom_call.1} parent=1 // loop_footer
      %s21 = sadd.s32 1, %s17
    $region7: #{tpu_custom_call.1} parent=1 // loop_footer_branch
      %16 = sbr.rel target = $region3
    $region8: #{tpu_custom_call.1} parent=1 // loop_exit
      _
    %357 = vsyncpa [#allocation3], 1
    %s358 = scalar_lea.sflag [#allocation3], 1
    %359 = vsyncpa %s358, 1
    %360 = vsyncpa [#allocation4], 1
    %s361 = scalar_lea.sflag [#allocation4], 1
    %362 = vsyncpa %s361, 1
    %363 = vsyncpa [#allocation5], 1
    %s364 = scalar_lea.sflag [#allocation5], 1
    %365 = vsyncpa %s364, 1
    %366 = vsyncpa [#allocation6], 1
    %s367 = scalar_lea.sflag [#allocation6], 1
    %368 = vsyncpa %s367, 1

</llo_original>
